<compile_context>
chip_gen: v5e
topology: v5e:2x2
jax: 0.10.0
libtpu: 0.0.40
codegen_flags: <defaults>
</compile_context>

<pallas_src>
import jax
import jax.numpy as jnp
from jax.experimental import pallas as pl
from jax.experimental.pallas import tpu as pltpu


def _round_up(n, m):
    return -(-n // m) * m


def _mlp_kernel(x_ref, w1_ref, w2_ref, w3_ref, b1_ref, b2_ref, b3_ref,
                y_ref, h2_ref):
    # x tile: (tm, D_in) in the caller's dtype; single HBM read, cast in VMEM.
    x = x_ref[...].astype(jnp.bfloat16)

    # layer 1: Linear + ReLU  (bf16 MXU matmul, f32 accumulate, f32 epilogue)
    h1 = jnp.dot(x, w1_ref[...], preferred_element_type=jnp.float32) + b1_ref[...]
    h1 = jnp.maximum(h1, 0.0)

    # layer 2: Linear + ReLU
    h2 = jnp.dot(h1.astype(jnp.bfloat16), w2_ref[...],
                 preferred_element_type=jnp.float32) + b2_ref[...]
    h2 = jnp.maximum(h2, 0.0)

    # layer 3: Linear (no activation)
    y = jnp.dot(h2.astype(jnp.bfloat16), w3_ref[...],
                preferred_element_type=jnp.float32) + b3_ref[...]

    y_ref[...] = y.astype(y_ref.dtype)      # bf16 lane-dense writeback
    h2_ref[...] = h2.astype(h2_ref.dtype)   # bf16 lane-dense writeback


def prepare_params(params):
    """One-time parameter prep (do NOT redo per forward call).

    Transposes torch-style (out, in) weights to (in, out), zero-pads every
    output (lane) dimension to a multiple of 128, casts weights to bf16 for
    the MXU, and keeps per-layer f32 bias rows.  The contraction (K) dims
    stay at their true sizes so x needs no lane padding.
    """
    w1, w2, w3 = params["w1"], params["w2"], params["w3"]
    b1, b2, b3 = params["b1"], params["b2"], params["b3"]

    h1, d_in = w1.shape          # torch-style (out, in)
    h2 = w2.shape[0]
    d_out = w3.shape[0]

    h1p = _round_up(h1, 128)
    h2p = _round_up(h2, 128)
    dop = _round_up(d_out, 128)

    def pad_w(w_t, rows, cols):
        out = jnp.zeros((rows, cols), jnp.bfloat16)
        return out.at[:w_t.shape[0], :w_t.shape[1]].set(w_t.astype(jnp.bfloat16))

    def pad_b(b, cols):
        out = jnp.zeros((1, cols), jnp.float32)
        return out.at[0, :b.shape[0]].set(b.astype(jnp.float32))

    return {
        "w1": pad_w(w1.T, d_in, h1p),
        "w2": pad_w(w2.T, h1p, h2p),
        "w3": pad_w(w3.T, h2p, dop),
        "b1": pad_b(b1, h1p),
        "b2": pad_b(b2, h2p),
        "b3": pad_b(b3, dop),
        "dims": (d_in, h1, h2, d_out),
        "pdims": (h1p, h2p, dop),
    }


def _choose_tm(batch, block_m):
    """Batch tile: multiple of 16, capped at block_m, sized so that large
    batches split into an even number (>=2) of tiles for the 2 v7x TCs."""
    tm = _round_up(max(1, -(-batch // 2)), 16)   # ~half the batch, 16-aligned
    return max(16, min(block_m, tm))


def mlp_forward(x, prep, *, block_m=512):
    """x: [B, ...] (flattened inside).  prep: output of prepare_params().

    Returns (y_pred [B, D_out], h_2 [B, H2]) matching the torch forward.
    """
    d_in, h1, h2, d_out = prep["dims"]
    h1p, h2p, dop = prep["pdims"]

    B = x.shape[0]
    x2d = x.reshape(B, -1)
    assert x2d.shape[1] == d_in

    # TODO(synk): for tiny batches (B <~ 64) a plain fused-XLA dense path beats
    # the kernel (grid of 1 is pure fixed overhead); kept on the Pallas path
    # here so the kernel is always exercised.
    tm = _choose_tm(B, block_m)
    grid = pl.cdiv(B, tm)

    y_p, h2_p = pl.pallas_call(
        _mlp_kernel,
        out_shape=(
            jax.ShapeDtypeStruct((B, dop), jnp.bfloat16),
            jax.ShapeDtypeStruct((B, h2p), jnp.bfloat16),
        ),
        grid=(grid,),
        in_specs=[
            pl.BlockSpec((tm, d_in), lambda i: (i, 0)),    # x tiles stream over batch
            pl.BlockSpec((d_in, h1p), lambda i: (0, 0)),   # W1 VMEM-resident
            pl.BlockSpec((h1p, h2p), lambda i: (0, 0)),    # W2 VMEM-resident
            pl.BlockSpec((h2p, dop), lambda i: (0, 0)),    # W3 VMEM-resident
            pl.BlockSpec((1, h1p), lambda i: (0, 0)),      # b1
            pl.BlockSpec((1, h2p), lambda i: (0, 0)),      # b2
            pl.BlockSpec((1, dop), lambda i: (0, 0)),      # b3
        ],
        out_specs=(
            pl.BlockSpec((tm, dop), lambda i: (i, 0)),
            pl.BlockSpec((tm, h2p), lambda i: (i, 0)),
        ),
        compiler_params=pltpu.CompilerParams(
            dimension_semantics=("parallel",),   # shard batch tiles across TCs
            vmem_limit_bytes=32 * 1024 * 1024,   # ~6 MiB working set; not binding
        ),
    )(x2d, prep["w1"], prep["w2"], prep["w3"],
      prep["b1"], prep["b2"], prep["b3"])

    # Slice the lane padding off; return f32 to match the torch module.
    return (y_p[:, :d_out].astype(jnp.float32),
            h2_p[:, :h2].astype(jnp.float32))


def init_params(key, dims):
    """Deterministic init mimicking nn.Linear default (uniform +/- 1/sqrt(fan_in)).

    dims: list of (in_features, out_features) tuples, torch-style.
    Weights stored as (out, in) like torch's nn.Linear.weight.
    """
    params = {}
    names = [("w1", "b1"), ("w2", "b2"), ("w3", "b3")]
    for (wn, bn), (fan_in, fan_out) in zip(names, dims):
        key, kw, kb = jax.random.split(key, 3)
        bound = 1.0 / (fan_in ** 0.5)
        params[wn] = jax.random.uniform(
            kw, (fan_out, fan_in), jnp.float32, -bound, bound)
        params[bn] = jax.random.uniform(
            kb, (fan_out,), jnp.float32, -bound, bound)
    return params


def mlp_reference(x, params):
    B = x.shape[0]
    x2d = x.reshape(B, -1).astype(jnp.float32)
    h1 = jnp.maximum(x2d @ params["w1"].T + params["b1"], 0.0)
    h2 = jnp.maximum(h1 @ params["w2"].T + params["b2"], 0.0)
    y = h2 @ params["w3"].T + params["b3"]
    return y, h2


if __name__ == "__main__":
    key = jax.random.PRNGKey(0)

    # Input consistent with a flattened NCHW image batch: [2, 4, 16, 16] -> D_in = 1024
    B, C, H, W = 2, 4, 16, 16
    D_in = C * H * W
    dims = [(D_in, 32), (32, 32), (32, 10)]  # torch-style (in, out) per layer

    kx, kp = jax.random.split(key)
    x = jax.random.normal(kx, (B, C, H, W), jnp.float32)
    params = init_params(kp, dims)
    prep = prepare_params(params)            # one-time transpose/pad/cast

    y_pred, h_2 = mlp_forward(x, prep)
    jax.block_until_ready((y_pred, h_2))

    # correctness check vs pure-JAX f32 reference (bf16 MXU/outputs -> looser tol)
    y_ref, h_ref = mlp_reference(x, params)
    assert y_pred.shape == (B, dims[-1][1]) and h_2.shape == (B, dims[1][1])
    assert jnp.allclose(y_pred, y_ref, atol=5e-2, rtol=5e-2)
    assert jnp.allclose(h_2, h_ref, atol=5e-2, rtol=5e-2)

    # multi-tile path with a partial last tile: B=300 -> tm=160, grid=2
    # (even grid -> both v7x TensorCores get a balanced tile each)
    kx2 = jax.random.fold_in(kx, 1)
    x_big = jax.random.normal(kx2, (300, C, H, W), jnp.float32)
    y_big, h_big = mlp_forward(x_big, prep)
    jax.block_until_ready((y_big, h_big))
    y_big_ref, h_big_ref = mlp_reference(x_big, params)
    assert y_big.shape == (300, dims[-1][1]) and h_big.shape == (300, dims[1][1])
    assert jnp.allclose(y_big, y_big_ref, atol=5e-2, rtol=5e-2)
    assert jnp.allclose(h_big, h_big_ref, atol=5e-2, rtol=5e-2)

    print("KERNEL_OK")
</pallas_src>

<mosaic_0001>
module attributes {stable_mosaic.version = 11 : i64} {
  func.func @_mlp_kernel(%arg0: i32, %arg1: memref<16x1024xf32, #tpu.memory_space<vmem>>, %arg2: memref<1024x128xbf16, #tpu.memory_space<vmem>>, %arg3: memref<128x128xbf16, #tpu.memory_space<vmem>>, %arg4: memref<128x128xbf16, #tpu.memory_space<vmem>>, %arg5: memref<1x128xf32, #tpu.memory_space<vmem>>, %arg6: memref<1x128xf32, #tpu.memory_space<vmem>>, %arg7: memref<1x128xf32, #tpu.memory_space<vmem>>, %arg8: memref<16x128xbf16, #tpu.memory_space<vmem>>, %arg9: memref<16x128xbf16, #tpu.memory_space<vmem>>) attributes {dimension_semantics = [#tpu.dimension_semantics<parallel>], iteration_bounds = array<i64: 1>, scalar_prefetch = 0 : i64, scratch_operands = 0 : i64, tpu.core_type = #tpu.core_type<tc>, window_params = [{transform_indices = @transform_0, window_bounds = array<i64: 16, 1024>}, {pipeline_mode = #tpu.pipeline_mode<synchronous>, transform_indices = @transform_1, window_bounds = array<i64: 1024, 128>}, {pipeline_mode = #tpu.pipeline_mode<synchronous>, transform_indices = @transform_2, window_bounds = array<i64: 128, 128>}, {pipeline_mode = #tpu.pipeline_mode<synchronous>, transform_indices = @transform_3, window_bounds = array<i64: 128, 128>}, {pipeline_mode = #tpu.pipeline_mode<synchronous>, transform_indices = @transform_4, window_bounds = array<i64: 1, 128>}, {pipeline_mode = #tpu.pipeline_mode<synchronous>, transform_indices = @transform_5, window_bounds = array<i64: 1, 128>}, {pipeline_mode = #tpu.pipeline_mode<synchronous>, transform_indices = @transform_6, window_bounds = array<i64: 1, 128>}, {transform_indices = @transform_7, window_bounds = array<i64: 16, 128>}, {transform_indices = @transform_8, window_bounds = array<i64: 16, 128>}]} {
    %c0 = arith.constant 0 : index
    %c0_0 = arith.constant 0 : index
    %0 = vector.load %arg1[%c0, %c0_0] : memref<16x1024xf32, #tpu.memory_space<vmem>>, vector<16x1024xf32>
    %1 = arith.truncf %0 : vector<16x1024xf32> to vector<16x1024xbf16>
    %c0_1 = arith.constant 0 : index
    %c0_2 = arith.constant 0 : index
    %2 = vector.load %arg2[%c0_1, %c0_2] : memref<1024x128xbf16, #tpu.memory_space<vmem>>, vector<1024x128xbf16>
    %cst = arith.constant dense<0.000000e+00> : vector<16x128xf32>
    %3 = tpu.matmul %1, %2, %cst {dimension_numbers = #tpu.dot_dimension_numbers<[1], [0], [0], [1], [0, 0, 1, 1], [], []>} : vector<16x1024xbf16>, vector<1024x128xbf16>, vector<16x128xf32> -> vector<16x128xf32>
    %c0_3 = arith.constant 0 : index
    %c0_4 = arith.constant 0 : index
    %4 = vector.load %arg5[%c0_3, %c0_4] : memref<1x128xf32, #tpu.memory_space<vmem>>, vector<1x128xf32>
    %5 = vector.broadcast %4 : vector<1x128xf32> to vector<16x128xf32>
    %6 = arith.addf %3, %5 : vector<16x128xf32>
    %cst_5 = arith.constant 0.000000e+00 : f32
    %7 = vector.broadcast %cst_5 : f32 to vector<16x128xf32>
    %8 = arith.maximumf %6, %7 : vector<16x128xf32>
    %9 = arith.truncf %8 : vector<16x128xf32> to vector<16x128xbf16>
    %c0_6 = arith.constant 0 : index
    %c0_7 = arith.constant 0 : index
    %10 = vector.load %arg3[%c0_6, %c0_7] : memref<128x128xbf16, #tpu.memory_space<vmem>>, vector<128x128xbf16>
    %cst_8 = arith.constant dense<0.000000e+00> : vector<16x128xf32>
    %11 = tpu.matmul %9, %10, %cst_8 {dimension_numbers = #tpu.dot_dimension_numbers<[1], [0], [0], [1], [0, 0, 1, 1], [], []>} : vector<16x128xbf16>, vector<128x128xbf16>, vector<16x128xf32> -> vector<16x128xf32>
    %c0_9 = arith.constant 0 : index
    %c0_10 = arith.constant 0 : index
    %12 = vector.load %arg6[%c0_9, %c0_10] : memref<1x128xf32, #tpu.memory_space<vmem>>, vector<1x128xf32>
    %13 = vector.broadcast %12 : vector<1x128xf32> to vector<16x128xf32>
    %14 = arith.addf %11, %13 : vector<16x128xf32>
    %cst_11 = arith.constant 0.000000e+00 : f32
    %15 = vector.broadcast %cst_11 : f32 to vector<16x128xf32>
    %16 = arith.maximumf %14, %15 : vector<16x128xf32>
    %17 = arith.truncf %16 : vector<16x128xf32> to vector<16x128xbf16>
    %c0_12 = arith.constant 0 : index
    %c0_13 = arith.constant 0 : index
    %18 = vector.load %arg4[%c0_12, %c0_13] : memref<128x128xbf16, #tpu.memory_space<vmem>>, vector<128x128xbf16>
    %cst_14 = arith.constant dense<0.000000e+00> : vector<16x128xf32>
    %19 = tpu.matmul %17, %18, %cst_14 {dimension_numbers = #tpu.dot_dimension_numbers<[1], [0], [0], [1], [0, 0, 1, 1], [], []>} : vector<16x128xbf16>, vector<128x128xbf16>, vector<16x128xf32> -> vector<16x128xf32>
    %c0_15 = arith.constant 0 : index
    %c0_16 = arith.constant 0 : index
    %20 = vector.load %arg7[%c0_15, %c0_16] : memref<1x128xf32, #tpu.memory_space<vmem>>, vector<1x128xf32>
    %21 = vector.broadcast %20 : vector<1x128xf32> to vector<16x128xf32>
    %22 = arith.addf %19, %21 : vector<16x128xf32>
    %23 = arith.truncf %22 : vector<16x128xf32> to vector<16x128xbf16>
    %c0_17 = arith.constant 0 : index
    %c0_18 = arith.constant 0 : index
    %24 = vector.load %arg8[%c0_17, %c0_18] : memref<16x128xbf16, #tpu.memory_space<vmem>>, vector<16x128xbf16>
    tpu.vector_store %arg8[%c0_17, %c0_18], %23 {strides = array<i32>} : memref<16x128xbf16, #tpu.memory_space<vmem>>, vector<16x128xbf16>,
    %25 = arith.truncf %16 : vector<16x128xf32> to vector<16x128xbf16>
    %c0_19 = arith.constant 0 : index
    %c0_20 = arith.constant 0 : index
    %26 = vector.load %arg9[%c0_19, %c0_20] : memref<16x128xbf16, #tpu.memory_space<vmem>>, vector<16x128xbf16>
    tpu.vector_store %arg9[%c0_19, %c0_20], %25 {strides = array<i32>} : memref<16x128xbf16, #tpu.memory_space<vmem>>, vector<16x128xbf16>,
    return
  }
  func.func @transform_0(%arg0: i32) -> (i32, i32) {
    %c0_i32 = arith.constant 0 : i32
    %c0_i32_0 = arith.constant 0 : i32
    return %arg0, %c0_i32 : i32, i32
  }
  func.func @transform_1(%arg0: i32) -> (i32, i32) {
    %c0_i32 = arith.constant 0 : i32
    %c0_i32_0 = arith.constant 0 : i32
    %c0_i32_1 = arith.constant 0 : i32
    return %c0_i32, %c0_i32_0 : i32, i32
  }
  func.func @transform_2(%arg0: i32) -> (i32, i32) {
    %c0_i32 = arith.constant 0 : i32
    %c0_i32_0 = arith.constant 0 : i32
    %c0_i32_1 = arith.constant 0 : i32
    return %c0_i32, %c0_i32_0 : i32, i32
  }
  func.func @transform_3(%arg0: i32) -> (i32, i32) {
    %c0_i32 = arith.constant 0 : i32
    %c0_i32_0 = arith.constant 0 : i32
    %c0_i32_1 = arith.constant 0 : i32
    return %c0_i32, %c0_i32_0 : i32, i32
  }
  func.func @transform_4(%arg0: i32) -> (i32, i32) {
    %c0_i32 = arith.constant 0 : i32
    %c0_i32_0 = arith.constant 0 : i32
    %c0_i32_1 = arith.constant 0 : i32
    return %c0_i32, %c0_i32_0 : i32, i32
  }
  func.func @transform_5(%arg0: i32) -> (i32, i32) {
    %c0_i32 = arith.constant 0 : i32
    %c0_i32_0 = arith.constant 0 : i32
    %c0_i32_1 = arith.constant 0 : i32
    return %c0_i32, %c0_i32_0 : i32, i32
  }
  func.func @transform_6(%arg0: i32) -> (i32, i32) {
    %c0_i32 = arith.constant 0 : i32
    %c0_i32_0 = arith.constant 0 : i32
    %c0_i32_1 = arith.constant 0 : i32
    return %c0_i32, %c0_i32_0 : i32, i32
  }
  func.func @transform_7(%arg0: i32) -> (i32, i32) {
    %c0_i32 = arith.constant 0 : i32
    %c0_i32_0 = arith.constant 0 : i32
    return %arg0, %c0_i32 : i32, i32
  }
  func.func @transform_8(%arg0: i32) -> (i32, i32) {
    %c0_i32 = arith.constant 0 : i32
    %c0_i32_0 = arith.constant 0 : i32
    return %arg0, %c0_i32 : i32, i32
  }
}

</mosaic_0001>

<llo_original>
// kernel: tpu_custom_call.1
$region0: #{tpu_custom_call.1}
  #allocation0 [shape = 'u32[]', space=smem, size = 0x4, offset = 0x4, fixed_abs, tag = 'smem constant byte address 0x4 - core index']
  #allocation1 [shape = 'u32[72,128]{1,0:T(1,128)}', space=vmem, size = 0x9000, scoped, tag = 'internal scratch']
  %s0 = inlined_call_operand.hbm [shape: f32[2,1024], index: 0, kind: input, shape index: {}]
  %s1 = inlined_call_operand.hbm [shape: bf16[1024,128], index: 1, kind: input, shape index: {}]
  %s2 = inlined_call_operand.hbm [shape: bf16[128,128], index: 2, kind: input, shape index: {}]
  %s3 = inlined_call_operand.hbm [shape: bf16[128,128], index: 3, kind: input, shape index: {}]
  %s4 = inlined_call_operand.vmem [shape: f32[1,128], index: 4, kind: input, shape index: {}]
  %s5 = inlined_call_operand.vmem [shape: f32[1,128], index: 5, kind: input, shape index: {}]
  %s6 = inlined_call_operand.vmem [shape: f32[1,128], index: 6, kind: input, shape index: {}]
  %s7 = inlined_call_operand.hbm [shape: bf16[2,128], index: 7, kind: output, shape index: {0}]
  %s8 = inlined_call_operand.hbm [shape: bf16[2,128], index: 8, kind: output, shape index: {1}]
  %9 = xla_tuple %s7, %s8
  %s10 = sld [smem:[#allocation0]]
  $region62: #{tpu_custom_call.1} parent=0
    _
  %s12 = ssub.s32 1, %s10
  %s13 = scalar_select 0, %s12, %s10
  $region1: #{tpu_custom_call.1} parent=0
    #allocation2 [shape = 'u8[65536]{0}', space=vmem, size = 0x10000, scoped, tag = 'input window, operand 0, single buffered']
    #allocation3 [shape = 's32[1]{0}', space=sflag, size = 0x4, scoped, tag = 'scoped memory for tpu_custom_call.1']
    #allocation4 [shape = 's32[1]{0}', space=sflag, size = 0x4, scoped, tag = 'scoped memory for tpu_custom_call.1']
    #allocation5 [shape = 'u8[262144]{0}', space=vmem, size = 0x40000, scoped, tag = 'input window, operand 1, single buffered']
    #allocation6 [shape = 's32[1]{0}', space=sflag, size = 0x4, scoped, tag = 'scoped memory for tpu_custom_call.1']
    #allocation7 [shape = 'u8[32768]{0}', space=vmem, size = 0x8000, scoped, tag = 'input window, operand 2, single buffered']
    #allocation8 [shape = 'u8[32768]{0}', space=vmem, size = 0x8000, scoped, tag = 'input window, operand 3, single buffered']
    #allocation9 [shape = 's32[1]{0}', space=sflag, size = 0x4, scoped, tag = 'scoped memory for tpu_custom_call.1']
    #allocation10 [shape = 'u8[4096]{0}', space=vmem, size = 0x1000, scoped, tag = 'output window, operand 0, single buffered']
    #allocation11 [shape = 'u8[4096]{0}', space=vmem, size = 0x1000, scoped, tag = 'output window, operand 1, single buffered']
    #allocation12 [shape = 's32[1]{0}', space=sflag, size = 0x4, scoped, tag = 'scoped memory for tpu_custom_call.1']
    %14 = vsyncpa [#allocation3], 0
    %15 = vsyncpa [#allocation6], 0
    %16 = vsyncpa [#allocation9], 0
    %17 = vsyncpa [#allocation4], 0
    %18 = vsyncpa [#allocation12], 0
    // Predicated region
    $region2: #{tpu_custom_call.1} parent=1 // pred_check
      _
    $region3: #{tpu_custom_call.1} parent=1 // pred_check_branch
      %20 = sbr.rel (0) target = $region5
    $region4: #{tpu_custom_call.1} parent=1 // pred_region
      %22 = vsyncadd [#allocation3], 1792
      %s23 = sshll.u32 %s0, 4
      %s24 = int_to_ptr.hbm [resolvable:$true] %s23
      %s25 = sshll.u32 [#allocation2], 4
      %s26 = int_to_ptr.vmem [resolvable:$true] %s25
      %31 = dma.hbm_to_vmem [thread:$0]  %s24, 256, %s26, [#allocation3], 256, 256, 16
    $region5: #{tpu_custom_call.1} parent=1 // pred_fallthru
      _
    // Predicated region
    $region6: #{tpu_custom_call.1} parent=1 // pred_check
      _
    $region7: #{tpu_custom_call.1} parent=1 // pred_check_branch
      %33 = sbr.rel (0) target = $region9
    $region8: #{tpu_custom_call.1} parent=1 // pred_region
      %35 = vsyncadd [#allocation6], 0
      %s36 = sshll.u32 %s1, 4
      %s37 = int_to_ptr.hbm [resolvable:$true] %s36
      %s38 = sshll.u32 [#allocation5], 4
      %s39 = int_to_ptr.vmem [resolvable:$true] %s38
      %44 = dma.hbm_to_vmem [thread:$0]  %s37, 8192, %s39, [#allocation6], 64, 64, 4
    $region9: #{tpu_custom_call.1} parent=1 // pred_fallthru
      _
    // Predicated region
    $region10: #{tpu_custom_call.1} parent=1 // pred_check
      _
    $region11: #{tpu_custom_call.1} parent=1 // pred_check_branch
      %46 = sbr.rel (0) target = $region13
    $region12: #{tpu_custom_call.1} parent=1 // pred_region
      %48 = vsyncadd [#allocation6], 0
      %s49 = sshll.u32 %s2, 4
      %s50 = int_to_ptr.hbm [resolvable:$true] %s49
      %s51 = sshll.u32 [#allocation7], 4
      %s52 = int_to_ptr.vmem [resolvable:$true] %s51
      %57 = dma.hbm_to_vmem [thread:$0]  %s50, 1024, %s52, [#allocation6], 64, 64, 4
    $region13: #{tpu_custom_call.1} parent=1 // pred_fallthru
      _
    // Predicated region
    $region14: #{tpu_custom_call.1} parent=1 // pred_check
      _
    $region15: #{tpu_custom_call.1} parent=1 // pred_check_branch
      %59 = sbr.rel (0) target = $region17
    $region16: #{tpu_custom_call.1} parent=1 // pred_region
      %61 = vsyncadd [#allocation9], 0
      %s62 = sshll.u32 %s3, 4
      %s63 = int_to_ptr.hbm [resolvable:$true] %s62
      %s64 = sshll.u32 [#allocation8], 4
      %s65 = int_to_ptr.vmem [resolvable:$true] %s64
      %70 = dma.hbm_to_vmem [thread:$0]  %s63, 1024, %s65, [#allocation9], 64, 64, 4
    $region17: #{tpu_custom_call.1} parent=1 // pred_fallthru
      _
    // Predicated region
    $region18: #{tpu_custom_call.1} parent=1 // pred_check
      _
    $region19: #{tpu_custom_call.1} parent=1 // pred_check_branch
      %72 = sbr.rel (0) target = $region21
    $region20: #{tpu_custom_call.1} parent=1 // pred_region
      _
    $region21: #{tpu_custom_call.1} parent=1 // pred_fallthru
      _
    // Predicated region
    $region22: #{tpu_custom_call.1} parent=1 // pred_check
      _
    $region23: #{tpu_custom_call.1} parent=1 // pred_check_branch
      %74 = sbr.rel (0) target = $region25
    $region24: #{tpu_custom_call.1} parent=1 // pred_region
      _
    $region25: #{tpu_custom_call.1} parent=1 // pred_fallthru
      _
    // Predicated region
    $region26: #{tpu_custom_call.1} parent=1 // pred_check
      _
    $region27: #{tpu_custom_call.1} parent=1 // pred_check_branch
      %76 = sbr.rel (0) target = $region29
    $region28: #{tpu_custom_call.1} parent=1 // pred_region
      _
    $region29: #{tpu_custom_call.1} parent=1 // pred_fallthru
      _
    // Predicated region
    $region30: #{tpu_custom_call.1} parent=1 // pred_check
      _
    $region31: #{tpu_custom_call.1} parent=1 // pred_check_branch
      %78 = sbr.rel (0) target = $region33
    $region32: #{tpu_custom_call.1} parent=1 // pred_region
      %80 = dma.done [#allocation3], 2048
    $region33: #{tpu_custom_call.1} parent=1 // pred_fallthru
      _
    // Predicated region
    $region34: #{tpu_custom_call.1} parent=1 // pred_check
      _
    $region35: #{tpu_custom_call.1} parent=1 // pred_check_branch
      %82 = sbr.rel (0) target = $region37
    $region36: #{tpu_custom_call.1} parent=1 // pred_region
      %84 = dma.done [#allocation6], 8192
    $region37: #{tpu_custom_call.1} parent=1 // pred_fallthru
      _
    // Predicated region
    $region38: #{tpu_custom_call.1} parent=1 // pred_check
      _
    $region39: #{tpu_custom_call.1} parent=1 // pred_check_branch
      %86 = sbr.rel (0) target = $region41
    $region40: #{tpu_custom_call.1} parent=1 // pred_region
      %88 = dma.done [#allocation6], 1024
    $region41: #{tpu_custom_call.1} parent=1 // pred_fallthru
      _
    // Predicated region
    $region42: #{tpu_custom_call.1} parent=1 // pred_check
      _
    $region43: #{tpu_custom_call.1} parent=1 // pred_check_branch
      %90 = sbr.rel (0) target = $region45
    $region44: #{tpu_custom_call.1} parent=1 // pred_region
      %92 = dma.done [#allocation9], 1024
    $region45: #{tpu_custom_call.1} parent=1 // pred_fallthru
      _
    %v93 = vld [vmem:[#allocation2] sm:$0xff]
    %v94 = vld [vmem:[#allocation2 + $0x8] sm:$0xff]
    %v95 = vld [vmem:[#allocation2 + $0x10] sm:$0xff]
    %v96 = vld [vmem:[#allocation2 + $0x18] sm:$0xff]
    %v97 = vld [vmem:[#allocation2 + $0x20] sm:$0xff]
    %v98 = vld [vmem:[#allocation2 + $0x28] sm:$0xff]
    %v99 = vld [vmem:[#allocation2 + $0x30] sm:$0xff]
    %v100 = vld [vmem:[#allocation2 + $0x38] sm:$0xff]
    %v101 = vld [vmem:[#allocation2 + $0x40] sm:$0xff]
    %v102 = vld [vmem:[#allocation2 + $0x48] sm:$0xff]
    %v103 = vld [vmem:[#allocation2 + $0x50] sm:$0xff]
    %v104 = vld [vmem:[#allocation2 + $0x58] sm:$0xff]
    %v105 = vld [vmem:[#allocation2 + $0x60] sm:$0xff]
    %v106 = vld [vmem:[#allocation2 + $0x68] sm:$0xff]
    %v107 = vld [vmem:[#allocation2 + $0x70] sm:$0xff]
    %v108 = vld [vmem:[#allocation2 + $0x78] sm:$0xff]
    %125 = vst [vmem:[#allocation1] ss:$4 sm:$0xff] %v93
    %s126 = scalar_lea.vmem [#allocation1], 1
    %127 = vst [vmem:[%s126] ss:$4 sm:$0xff] %v95
    %s128 = scalar_lea.vmem [#allocation1], 2
    %129 = vst [vmem:[%s128] ss:$4 sm:$0xff] %v97
    %s130 = scalar_lea.vmem [#allocation1], 3
    %131 = vst [vmem:[%s130] ss:$4 sm:$0xff] %v99
    %s132 = scalar_lea.vmem [#allocation1], 32
    %133 = vst [vmem:[%s132] ss:$4 sm:$0xff] %v94
    %s134 = scalar_lea.vmem [#allocation1], 33
    %135 = vst [vmem:[%s134] ss:$4 sm:$0xff] %v96
    %s136 = scalar_lea.vmem [#allocation1], 34
    %137 = vst [vmem:[%s136] ss:$4 sm:$0xff] %v98
    %s138 = scalar_lea.vmem [#allocation1], 35
    %139 = vst [vmem:[%s138] ss:$4 sm:$0xff] %v100
    %v140 = vld.sshfl [vmem:[#allocation1] sm:$0xff pattern:$0x73625140]
    %v141 = vld.sshfl [vmem:[#allocation1 + $0x8] sm:$0xff pattern:$0x73625140]
    %v142 = vld.sshfl [vmem:[#allocation1 + $0x10] sm:$0xff pattern:$0x73625140]
    %v143 = vld.sshfl [vmem:[#allocation1 + $0x18] sm:$0xff pattern:$0x73625140]
    %v144 = vld.sshfl [vmem:[#allocation1 + $0x20] sm:$0xff pattern:$0x73625140]
    %v145 = vld.sshfl [vmem:[#allocation1 + $0x28] sm:$0xff pattern:$0x73625140]
    %v146 = vld.sshfl [vmem:[#allocation1 + $0x30] sm:$0xff pattern:$0x73625140]
    %v147 = vld.sshfl [vmem:[#allocation1 + $0x38] sm:$0xff pattern:$0x73625140]
    %148 = vst [vmem:[#allocation1] ss:$4 sm:$0xff] %v101
    %149 = vst [vmem:[%s126] ss:$4 sm:$0xff] %v103
    %150 = vst [vmem:[%s128] ss:$4 sm:$0xff] %v105
    %151 = vst [vmem:[%s130] ss:$4 sm:$0xff] %v107
    %152 = vst [vmem:[%s132] ss:$4 sm:$0xff] %v102
    %153 = vst [vmem:[%s134] ss:$4 sm:$0xff] %v104
    %154 = vst [vmem:[%s136] ss:$4 sm:$0xff] %v106
    %155 = vst [vmem:[%s138] ss:$4 sm:$0xff] %v108
    %v156 = vld.sshfl [vmem:[#allocation1] sm:$0xff pattern:$0x73625140]
    %v157 = vld.sshfl [vmem:[#allocation1 + $0x8] sm:$0xff pattern:$0x73625140]
    %v158 = vld.sshfl [vmem:[#allocation1 + $0x10] sm:$0xff pattern:$0x73625140]
    %v159 = vld.sshfl [vmem:[#allocation1 + $0x18] sm:$0xff pattern:$0x73625140]
    %v160 = vld.sshfl [vmem:[#allocation1 + $0x20] sm:$0xff pattern:$0x73625140]
    %v161 = vld.sshfl [vmem:[#allocation1 + $0x28] sm:$0xff pattern:$0x73625140]
    %v162 = vld.sshfl [vmem:[#allocation1 + $0x30] sm:$0xff pattern:$0x73625140]
    %v163 = vld.sshfl [vmem:[#allocation1 + $0x38] sm:$0xff pattern:$0x73625140]
    %v180 = vpack.c.bf16 %v156, %v140
    %v181 = vpack.c.bf16 %v157, %v141
    %v182 = vpack.c.bf16 %v158, %v142
    %v183 = vpack.c.bf16 %v159, %v143
    %v184 = vpack.c.bf16 %v160, %v144
    %v185 = vpack.c.bf16 %v161, %v145
    %v186 = vpack.c.bf16 %v162, %v146
    %v187 = vpack.c.bf16 %v163, %v147
    %v188 = vld [vmem:[#allocation5] sm:$0xf]
    %v189 = vld [vmem:[#allocation5 + $0x4] sm:$0xf]
    %v190 = vld [vmem:[#allocation5 + $0x8] sm:$0xf]
    %v191 = vld [vmem:[#allocation5 + $0xc] sm:$0xf]
    %v192 = vld [vmem:[#allocation5 + $0x10] sm:$0xf]
    %v193 = vld [vmem:[#allocation5 + $0x14] sm:$0xf]
    %v194 = vld [vmem:[#allocation5 + $0x18] sm:$0xf]
    %v195 = vld [vmem:[#allocation5 + $0x1c] sm:$0xf]
    %v196 = vld [vmem:[#allocation5 + $0x20] sm:$0xf]
    %v197 = vld [vmem:[#allocation5 + $0x24] sm:$0xf]
    %v198 = vld [vmem:[#allocation5 + $0x28] sm:$0xf]
    %v199 = vld [vmem:[#allocation5 + $0x2c] sm:$0xf]
    %v200 = vld [vmem:[#allocation5 + $0x30] sm:$0xf]
    %v201 = vld [vmem:[#allocation5 + $0x34] sm:$0xf]
    %v202 = vld [vmem:[#allocation5 + $0x38] sm:$0xf]
    %v203 = vld [vmem:[#allocation5 + $0x3c] sm:$0xf]
    %v204 = vld [vmem:[#allocation5 + $0x40] sm:$0xf]
    %v205 = vld [vmem:[#allocation5 + $0x44] sm:$0xf]
    %v206 = vld [vmem:[#allocation5 + $0x48] sm:$0xf]
    %v207 = vld [vmem:[#allocation5 + $0x4c] sm:$0xf]
    %v208 = vld [vmem:[#allocation5 + $0x50] sm:$0xf]
    %v209 = vld [vmem:[#allocation5 + $0x54] sm:$0xf]
    %v210 = vld [vmem:[#allocation5 + $0x58] sm:$0xf]
    %v211 = vld [vmem:[#allocation5 + $0x5c] sm:$0xf]
    %v212 = vld [vmem:[#allocation5 + $0x60] sm:$0xf]
    %v213 = vld [vmem:[#allocation5 + $0x64] sm:$0xf]
    %v214 = vld [vmem:[#allocation5 + $0x68] sm:$0xf]
    %v215 = vld [vmem:[#allocation5 + $0x6c] sm:$0xf]
    %v216 = vld [vmem:[#allocation5 + $0x70] sm:$0xf]
    %v217 = vld [vmem:[#allocation5 + $0x74] sm:$0xf]
    %v218 = vld [vmem:[#allocation5 + $0x78] sm:$0xf]
    %v219 = vld [vmem:[#allocation5 + $0x7c] sm:$0xf]
    %v220 = vld [vmem:[#allocation5 + $0x80] sm:$0xf]
    %v221 = vld [vmem:[#allocation5 + $0x84] sm:$0xf]
    %v222 = vld [vmem:[#allocation5 + $0x88] sm:$0xf]
    %v223 = vld [vmem:[#allocation5 + $0x8c] sm:$0xf]
    %v224 = vld [vmem:[#allocation5 + $0x90] sm:$0xf]
    %v225 = vld [vmem:[#allocation5 + $0x94] sm:$0xf]
    %v226 = vld [vmem:[#allocation5 + $0x98] sm:$0xf]
    %v227 = vld [vmem:[#allocation5 + $0x9c] sm:$0xf]
    %v228 = vld [vmem:[#allocation5 + $0xa0] sm:$0xf]
    %v229 = vld [vmem:[#allocation5 + $0xa4] sm:$0xf]
    %v230 = vld [vmem:[#allocation5 + $0xa8] sm:$0xf]
    %v231 = vld [vmem:[#allocation5 + $0xac] sm:$0xf]
    %v232 = vld [vmem:[#allocation5 + $0xb0] sm:$0xf]
    %v233 = vld [vmem:[#allocation5 + $0xb4] sm:$0xf]
    %v234 = vld [vmem:[#allocation5 + $0xb8] sm:$0xf]
    %v235 = vld [vmem:[#allocation5 + $0xbc] sm:$0xf]
    %v236 = vld [vmem:[#allocation5 + $0xc0] sm:$0xf]
    %v237 = vld [vmem:[#allocation5 + $0xc4] sm:$0xf]
    %v238 = vld [vmem:[#allocation5 + $0xc8] sm:$0xf]
    %v239 = vld [vmem:[#allocation5 + $0xcc] sm:$0xf]
    %v240 = vld [vmem:[#allocation5 + $0xd0] sm:$0xf]
    %v241 = vld [vmem:[#allocation5 + $0xd4] sm:$0xf]
    %v242 = vld [vmem:[#allocation5 + $0xd8] sm:$0xf]
    %v243 = vld [vmem:[#allocation5 + $0xdc] sm:$0xf]
    %v244 = vld [vmem:[#allocation5 + $0xe0] sm:$0xf]
    %v245 = vld [vmem:[#allocation5 + $0xe4] sm:$0xf]
    %v246 = vld [vmem:[#allocation5 + $0xe8] sm:$0xf]
    %v247 = vld [vmem:[#allocation5 + $0xec] sm:$0xf]
    %v248 = vld [vmem:[#allocation5 + $0xf0] sm:$0xf]
    %v249 = vld [vmem:[#allocation5 + $0xf4] sm:$0xf]
    %v250 = vld [vmem:[#allocation5 + $0xf8] sm:$0xf]
    %v251 = vld [vmem:[#allocation5 + $0xfc] sm:$0xf]
    %v252 = vld [vmem:[#allocation5 + $0x100] sm:$0xf]
    %v253 = vld [vmem:[#allocation5 + $0x104] sm:$0xf]
    %v254 = vld [vmem:[#allocation5 + $0x108] sm:$0xf]
    %v255 = vld [vmem:[#allocation5 + $0x10c] sm:$0xf]
    %v256 = vld [vmem:[#allocation5 + $0x110] sm:$0xf]
    %v257 = vld [vmem:[#allocation5 + $0x114] sm:$0xf]
    %v258 = vld [vmem:[#allocation5 + $0x118] sm:$0xf]
    %v259 = vld [vmem:[#allocation5 + $0x11c] sm:$0xf]
    %v260 = vld [vmem:[#allocation5 + $0x120] sm:$0xf]
    %v261 = vld [vmem:[#allocation5 + $0x124] sm:$0xf]
    %v262 = vld [vmem:[#allocation5 + $0x128] sm:$0xf]
    %v263 = vld [vmem:[#allocation5 + $0x12c] sm:$0xf]
    %v264 = vld [vmem:[#allocation5 + $0x130] sm:$0xf]
    %v265 = vld [vmem:[#allocation5 + $0x134] sm:$0xf]
    %v266 = vld [vmem:[#allocation5 + $0x138] sm:$0xf]
    %v267 = vld [vmem:[#allocation5 + $0x13c] sm:$0xf]
    %v268 = vld [vmem:[#allocation5 + $0x140] sm:$0xf]
    %v269 = vld [vmem:[#allocation5 + $0x144] sm:$0xf]
    %v270 = vld [vmem:[#allocation5 + $0x148] sm:$0xf]
    %v271 = vld [vmem:[#allocation5 + $0x14c] sm:$0xf]
    %v272 = vld [vmem:[#allocation5 + $0x150] sm:$0xf]
    %v273 = vld [vmem:[#allocation5 + $0x154] sm:$0xf]
    %v274 = vld [vmem:[#allocation5 + $0x158] sm:$0xf]
    %v275 = vld [vmem:[#allocation5 + $0x15c] sm:$0xf]
    %v276 = vld [vmem:[#allocation5 + $0x160] sm:$0xf]
    %v277 = vld [vmem:[#allocation5 + $0x164] sm:$0xf]
    %v278 = vld [vmem:[#allocation5 + $0x168] sm:$0xf]
    %v279 = vld [vmem:[#allocation5 + $0x16c] sm:$0xf]
    %v280 = vld [vmem:[#allocation5 + $0x170] sm:$0xf]
    %v281 = vld [vmem:[#allocation5 + $0x174] sm:$0xf]
    %v282 = vld [vmem:[#allocation5 + $0x178] sm:$0xf]
    %v283 = vld [vmem:[#allocation5 + $0x17c] sm:$0xf]
    %v284 = vld [vmem:[#allocation5 + $0x180] sm:$0xf]
    %v285 = vld [vmem:[#allocation5 + $0x184] sm:$0xf]
    %v286 = vld [vmem:[#allocation5 + $0x188] sm:$0xf]
    %v287 = vld [vmem:[#allocation5 + $0x18c] sm:$0xf]
    %v288 = vld [vmem:[#allocation5 + $0x190] sm:$0xf]
    %v289 = vld [vmem:[#allocation5 + $0x194] sm:$0xf]
    %v290 = vld [vmem:[#allocation5 + $0x198] sm:$0xf]
    %v291 = vld [vmem:[#allocation5 + $0x19c] sm:$0xf]
    %v292 = vld [vmem:[#allocation5 + $0x1a0] sm:$0xf]
    %v293 = vld [vmem:[#allocation5 + $0x1a4] sm:$0xf]
    %v294 = vld [vmem:[#allocation5 + $0x1a8] sm:$0xf]
    %v295 = vld [vmem:[#allocation5 + $0x1ac] sm:$0xf]
    %v296 = vld [vmem:[#allocation5 + $0x1b0] sm:$0xf]
    %v297 = vld [vmem:[#allocation5 + $0x1b4] sm:$0xf]
    %v298 = vld [vmem:[#allocation5 + $0x1b8] sm:$0xf]
    %v299 = vld [vmem:[#allocation5 + $0x1bc] sm:$0xf]
    %v300 = vld [vmem:[#allocation5 + $0x1c0] sm:$0xf]
    %v301 = vld [vmem:[#allocation5 + $0x1c4] sm:$0xf]
    %v302 = vld [vmem:[#allocation5 + $0x1c8] sm:$0xf]
    %v303 = vld [vmem:[#allocation5 + $0x1cc] sm:$0xf]
    %v304 = vld [vmem:[#allocation5 + $0x1d0] sm:$0xf]
    %v305 = vld [vmem:[#allocation5 + $0x1d4] sm:$0xf]
    %v306 = vld [vmem:[#allocation5 + $0x1d8] sm:$0xf]
    %v307 = vld [vmem:[#allocation5 + $0x1dc] sm:$0xf]
    %v308 = vld [vmem:[#allocation5 + $0x1e0] sm:$0xf]
    %v309 = vld [vmem:[#allocation5 + $0x1e4] sm:$0xf]
    %v310 = vld [vmem:[#allocation5 + $0x1e8] sm:$0xf]
    %v311 = vld [vmem:[#allocation5 + $0x1ec] sm:$0xf]
    %v312 = vld [vmem:[#allocation5 + $0x1f0] sm:$0xf]
    %v313 = vld [vmem:[#allocation5 + $0x1f4] sm:$0xf]
    %v314 = vld [vmem:[#allocation5 + $0x1f8] sm:$0xf]
    %v315 = vld [vmem:[#allocation5 + $0x1fc] sm:$0xf]
    %v316 = vld [vmem:[%s4] sm:$0x1]
    %v318 = vperm.slane %v316, 0
    %v448 = vunpack.c.l.b16 %v188
    %v449 = vunpack.c.l.b16 %v189
    %v450 = vunpack.c.l.b16 %v190
    %v451 = vunpack.c.l.b16 %v191
    %v452 = vunpack.c.l.b16 %v192
    %v453 = vunpack.c.l.b16 %v193
    %v454 = vunpack.c.l.b16 %v194
    %v455 = vunpack.c.l.b16 %v195
    %v456 = vunpack.c.l.b16 %v196
    %v457 = vunpack.c.l.b16 %v197
    %v458 = vunpack.c.l.b16 %v198
    %v459 = vunpack.c.l.b16 %v199
    %v460 = vunpack.c.l.b16 %v200
    %v461 = vunpack.c.l.b16 %v201
    %v462 = vunpack.c.l.b16 %v202
    %v463 = vunpack.c.l.b16 %v203
    %v464 = vunpack.c.l.b16 %v204
    %v465 = vunpack.c.l.b16 %v205
    %v466 = vunpack.c.l.b16 %v206
    %v467 = vunpack.c.l.b16 %v207
    %v468 = vunpack.c.l.b16 %v208
    %v469 = vunpack.c.l.b16 %v209
    %v470 = vunpack.c.l.b16 %v210
    %v471 = vunpack.c.l.b16 %v211
    %v472 = vunpack.c.l.b16 %v212
    %v473 = vunpack.c.l.b16 %v213
    %v474 = vunpack.c.l.b16 %v214
    %v475 = vunpack.c.l.b16 %v215
    %v476 = vunpack.c.l.b16 %v216
    %v477 = vunpack.c.l.b16 %v217
    %v478 = vunpack.c.l.b16 %v218
    %v479 = vunpack.c.l.b16 %v219
    %v480 = vunpack.c.l.b16 %v220
    %v481 = vunpack.c.l.b16 %v221
    %v482 = vunpack.c.l.b16 %v222
    %v483 = vunpack.c.l.b16 %v223
    %v484 = vunpack.c.l.b16 %v224
    %v485 = vunpack.c.l.b16 %v225
    %v486 = vunpack.c.l.b16 %v226
    %v487 = vunpack.c.l.b16 %v227
    %v488 = vunpack.c.l.b16 %v228
    %v489 = vunpack.c.l.b16 %v229
    %v490 = vunpack.c.l.b16 %v230
    %v491 = vunpack.c.l.b16 %v231
    %v492 = vunpack.c.l.b16 %v232
    %v493 = vunpack.c.l.b16 %v233
    %v494 = vunpack.c.l.b16 %v234
    %v495 = vunpack.c.l.b16 %v235
    %v496 = vunpack.c.l.b16 %v236
    %v497 = vunpack.c.l.b16 %v237
    %v498 = vunpack.c.l.b16 %v238
    %v499 = vunpack.c.l.b16 %v239
    %v500 = vunpack.c.l.b16 %v240
    %v501 = vunpack.c.l.b16 %v241
    %v502 = vunpack.c.l.b16 %v242
    %v503 = vunpack.c.l.b16 %v243
    %v504 = vunpack.c.l.b16 %v244
    %v505 = vunpack.c.l.b16 %v245
    %v506 = vunpack.c.l.b16 %v246
    %v507 = vunpack.c.l.b16 %v247
    %v508 = vunpack.c.l.b16 %v248
    %v509 = vunpack.c.l.b16 %v249
    %v510 = vunpack.c.l.b16 %v250
    %v511 = vunpack.c.l.b16 %v251
    %v512 = vunpack.c.l.b16 %v252
    %v513 = vunpack.c.l.b16 %v253
    %v514 = vunpack.c.l.b16 %v254
    %v515 = vunpack.c.l.b16 %v255
    %v516 = vunpack.c.l.b16 %v256
    %v517 = vunpack.c.l.b16 %v257
    %v518 = vunpack.c.l.b16 %v258
    %v519 = vunpack.c.l.b16 %v259
    %v520 = vunpack.c.l.b16 %v260
    %v521 = vunpack.c.l.b16 %v261
    %v522 = vunpack.c.l.b16 %v262
    %v523 = vunpack.c.l.b16 %v263
    %v524 = vunpack.c.l.b16 %v264
    %v525 = vunpack.c.l.b16 %v265
    %v526 = vunpack.c.l.b16 %v266
    %v527 = vunpack.c.l.b16 %v267
    %v528 = vunpack.c.l.b16 %v268
    %v529 = vunpack.c.l.b16 %v269
    %v530 = vunpack.c.l.b16 %v270
    %v531 = vunpack.c.l.b16 %v271
    %v532 = vunpack.c.l.b16 %v272
    %v533 = vunpack.c.l.b16 %v273
    %v534 = vunpack.c.l.b16 %v274
    %v535 = vunpack.c.l.b16 %v275
    %v536 = vunpack.c.l.b16 %v276
    %v537 = vunpack.c.l.b16 %v277
    %v538 = vunpack.c.l.b16 %v278
    %v539 = vunpack.c.l.b16 %v279
    %v540 = vunpack.c.l.b16 %v280
    %v541 = vunpack.c.l.b16 %v281
    %v542 = vunpack.c.l.b16 %v282
    %v543 = vunpack.c.l.b16 %v283
    %v544 = vunpack.c.l.b16 %v284
    %v545 = vunpack.c.l.b16 %v285
    %v546 = vunpack.c.l.b16 %v286
    %v547 = vunpack.c.l.b16 %v287
    %v548 = vunpack.c.l.b16 %v288
    %v549 = vunpack.c.l.b16 %v289
    %v550 = vunpack.c.l.b16 %v290
    %v551 = vunpack.c.l.b16 %v291
    %v552 = vunpack.c.l.b16 %v292
    %v553 = vunpack.c.l.b16 %v293
    %v554 = vunpack.c.l.b16 %v294
    %v555 = vunpack.c.l.b16 %v295
    %v556 = vunpack.c.l.b16 %v296
    %v557 = vunpack.c.l.b16 %v297
    %v558 = vunpack.c.l.b16 %v298
    %v559 = vunpack.c.l.b16 %v299
    %v560 = vunpack.c.l.b16 %v300
    %v561 = vunpack.c.l.b16 %v301
    %v562 = vunpack.c.l.b16 %v302
    %v563 = vunpack.c.l.b16 %v303
    %v564 = vunpack.c.l.b16 %v304
    %v565 = vunpack.c.l.b16 %v305
    %v566 = vunpack.c.l.b16 %v306
    %v567 = vunpack.c.l.b16 %v307
    %v568 = vunpack.c.l.b16 %v308
    %v569 = vunpack.c.l.b16 %v309
    %v570 = vunpack.c.l.b16 %v310
    %v571 = vunpack.c.l.b16 %v311
    %v572 = vunpack.c.l.b16 %v312
    %v573 = vunpack.c.l.b16 %v313
    %v574 = vunpack.c.l.b16 %v314
    %v575 = vunpack.c.l.b16 %v315
    %v576 = vpack.c.b16 %v449, %v448
    %v577 = vpack.c.b16 %v451, %v450
    %v578 = vpack.c.b16 %v453, %v452
    %v579 = vpack.c.b16 %v455, %v454
    %v580 = vpack.c.b16 %v457, %v456
    %v581 = vpack.c.b16 %v459, %v458
    %v582 = vpack.c.b16 %v461, %v460
    %v583 = vpack.c.b16 %v463, %v462
    %v584 = vpack.c.b16 %v465, %v464
    %v585 = vpack.c.b16 %v467, %v466
    %v586 = vpack.c.b16 %v469, %v468
    %v587 = vpack.c.b16 %v471, %v470
    %v588 = vpack.c.b16 %v473, %v472
    %v589 = vpack.c.b16 %v475, %v474
    %v590 = vpack.c.b16 %v477, %v476
    %v591 = vpack.c.b16 %v479, %v478
    %v592 = vpack.c.b16 %v481, %v480
    %v593 = vpack.c.b16 %v483, %v482
    %v594 = vpack.c.b16 %v485, %v484
    %v595 = vpack.c.b16 %v487, %v486
    %v596 = vpack.c.b16 %v489, %v488
    %v597 = vpack.c.b16 %v491, %v490
    %v598 = vpack.c.b16 %v493, %v492
    %v599 = vpack.c.b16 %v495, %v494
    %v600 = vpack.c.b16 %v497, %v496
    %v601 = vpack.c.b16 %v499, %v498
    %v602 = vpack.c.b16 %v501, %v500
    %v603 = vpack.c.b16 %v503, %v502
    %v604 = vpack.c.b16 %v505, %v504
    %v605 = vpack.c.b16 %v507, %v506
    %v606 = vpack.c.b16 %v509, %v508
    %v607 = vpack.c.b16 %v511, %v510
    %v608 = vpack.c.b16 %v513, %v512
    %v609 = vpack.c.b16 %v515, %v514
    %v610 = vpack.c.b16 %v517, %v516
    %v611 = vpack.c.b16 %v519, %v518
    %v612 = vpack.c.b16 %v521, %v520
    %v613 = vpack.c.b16 %v523, %v522
    %v614 = vpack.c.b16 %v525, %v524
    %v615 = vpack.c.b16 %v527, %v526
    %v616 = vpack.c.b16 %v529, %v528
    %v617 = vpack.c.b16 %v531, %v530
    %v618 = vpack.c.b16 %v533, %v532
    %v619 = vpack.c.b16 %v535, %v534
    %v620 = vpack.c.b16 %v537, %v536
    %v621 = vpack.c.b16 %v539, %v538
    %v622 = vpack.c.b16 %v541, %v540
    %v623 = vpack.c.b16 %v543, %v542
    %v624 = vpack.c.b16 %v545, %v544
    %v625 = vpack.c.b16 %v547, %v546
    %v626 = vpack.c.b16 %v549, %v548
    %v627 = vpack.c.b16 %v551, %v550
    %v628 = vpack.c.b16 %v553, %v552
    %v629 = vpack.c.b16 %v555, %v554
    %v630 = vpack.c.b16 %v557, %v556
    %v631 = vpack.c.b16 %v559, %v558
    %v632 = vpack.c.b16 %v561, %v560
    %v633 = vpack.c.b16 %v563, %v562
    %v634 = vpack.c.b16 %v565, %v564
    %v635 = vpack.c.b16 %v567, %v566
    %v636 = vpack.c.b16 %v569, %v568
    %v637 = vpack.c.b16 %v571, %v570
    %v638 = vpack.c.b16 %v573, %v572
    %v639 = vpack.c.b16 %v575, %v574
    %704 = vmatpush.bf16.msra.mxu0 %v583
    %705 = vmatpush.bf16.msra.mxu0 %v582
    %706 = vmatpush.bf16.msra.mxu0 %v581
    %707 = vmatpush.bf16.msra.mxu0 %v580
    %708 = vmatpush.bf16.msra.mxu0 %v579
    %709 = vmatpush.bf16.msra.mxu0 %v578
    %710 = vmatpush.bf16.msra.mxu0 %v577
    %711 = vmatpush.bf16.msra.mxu0 %v576
    %712 = vmatmul.bf16.gmra.mxu0 %v180
    %v713 = vpop.f32.mrf.mxu0
    %v714 = vadd.f32 %v318, %v713
    %v715 = vpop.f32.mrf.mxu0
    %v716 = vadd.f32 %v318, %v715
    %717 = vdwg.mxu0
    %718 = vmatpush.bf16.msra.mxu0 %v591
    %719 = vmatpush.bf16.msra.mxu0 %v590
    %720 = vmatpush.bf16.msra.mxu0 %v589
    %721 = vmatpush.bf16.msra.mxu0 %v588
    %722 = vmatpush.bf16.msra.mxu0 %v587
    %723 = vmatpush.bf16.msra.mxu0 %v586
    %724 = vmatpush.bf16.msra.mxu0 %v585
    %725 = vmatpush.bf16.msra.mxu0 %v584
    %726 = vmatmul.bf16.gmra.mxu0 %v181
    %v727 = vpop.f32.mrf.mxu0
    %v728 = vadd.f32 %v714, %v727
    %v729 = vpop.f32.mrf.mxu0
    %v730 = vadd.f32 %v716, %v729
    %731 = vdwg.mxu0
    %732 = vmatpush.bf16.msra.mxu0 %v599
    %733 = vmatpush.bf16.msra.mxu0 %v598
    %734 = vmatpush.bf16.msra.mxu0 %v597
    %735 = vmatpush.bf16.msra.mxu0 %v596
    %736 = vmatpush.bf16.msra.mxu0 %v595
    %737 = vmatpush.bf16.msra.mxu0 %v594
    %738 = vmatpush.bf16.msra.mxu0 %v593
    %739 = vmatpush.bf16.msra.mxu0 %v592
    %740 = vmatmul.bf16.gmra.mxu0 %v182
    %v741 = vpop.f32.mrf.mxu0
    %v742 = vadd.f32 %v728, %v741
    %v743 = vpop.f32.mrf.mxu0
    %v744 = vadd.f32 %v730, %v743
    %745 = vdwg.mxu0
    %746 = vmatpush.bf16.msra.mxu0 %v607
    %747 = vmatpush.bf16.msra.mxu0 %v606
    %748 = vmatpush.bf16.msra.mxu0 %v605
    %749 = vmatpush.bf16.msra.mxu0 %v604
    %750 = vmatpush.bf16.msra.mxu0 %v603
    %751 = vmatpush.bf16.msra.mxu0 %v602
    %752 = vmatpush.bf16.msra.mxu0 %v601
    %753 = vmatpush.bf16.msra.mxu0 %v600
    %754 = vmatmul.bf16.gmra.mxu0 %v183
    %v755 = vpop.f32.mrf.mxu0
    %v756 = vadd.f32 %v742, %v755
    %v757 = vpop.f32.mrf.mxu0
    %v758 = vadd.f32 %v744, %v757
    %759 = vdwg.mxu0
    %760 = vmatpush.bf16.msra.mxu0 %v615
    %761 = vmatpush.bf16.msra.mxu0 %v614
    %762 = vmatpush.bf16.msra.mxu0 %v613
    %763 = vmatpush.bf16.msra.mxu0 %v612
    %764 = vmatpush.bf16.msra.mxu0 %v611
    %765 = vmatpush.bf16.msra.mxu0 %v610
    %766 = vmatpush.bf16.msra.mxu0 %v609
    %767 = vmatpush.bf16.msra.mxu0 %v608
    %768 = vmatmul.bf16.gmra.mxu0 %v184
    %v769 = vpop.f32.mrf.mxu0
    %v770 = vadd.f32 %v756, %v769
    %v771 = vpop.f32.mrf.mxu0
    %v772 = vadd.f32 %v758, %v771
    %773 = vdwg.mxu0
    %774 = vmatpush.bf16.msra.mxu0 %v623
    %775 = vmatpush.bf16.msra.mxu0 %v622
    %776 = vmatpush.bf16.msra.mxu0 %v621
    %777 = vmatpush.bf16.msra.mxu0 %v620
    %778 = vmatpush.bf16.msra.mxu0 %v619
    %779 = vmatpush.bf16.msra.mxu0 %v618
    %780 = vmatpush.bf16.msra.mxu0 %v617
    %781 = vmatpush.bf16.msra.mxu0 %v616
    %782 = vmatmul.bf16.gmra.mxu0 %v185
    %v783 = vpop.f32.mrf.mxu0
    %v784 = vadd.f32 %v770, %v783
    %v785 = vpop.f32.mrf.mxu0
    %v786 = vadd.f32 %v772, %v785
    %787 = vdwg.mxu0
    %788 = vmatpush.bf16.msra.mxu0 %v631
    %789 = vmatpush.bf16.msra.mxu0 %v630
    %790 = vmatpush.bf16.msra.mxu0 %v629
    %791 = vmatpush.bf16.msra.mxu0 %v628
    %792 = vmatpush.bf16.msra.mxu0 %v627
    %793 = vmatpush.bf16.msra.mxu0 %v626
    %794 = vmatpush.bf16.msra.mxu0 %v625
    %795 = vmatpush.bf16.msra.mxu0 %v624
    %796 = vmatmul.bf16.gmra.mxu0 %v186
    %v797 = vpop.f32.mrf.mxu0
    %v798 = vadd.f32 %v784, %v797
    %v799 = vpop.f32.mrf.mxu0
    %v800 = vadd.f32 %v786, %v799
    %801 = vdwg.mxu0
    %802 = vmatpush.bf16.msra.mxu0 %v639
    %803 = vmatpush.bf16.msra.mxu0 %v638
    %804 = vmatpush.bf16.msra.mxu0 %v637
    %805 = vmatpush.bf16.msra.mxu0 %v636
    %806 = vmatpush.bf16.msra.mxu0 %v635
    %807 = vmatpush.bf16.msra.mxu0 %v634
    %808 = vmatpush.bf16.msra.mxu0 %v633
    %809 = vmatpush.bf16.msra.mxu0 %v632
    %810 = vmatmul.bf16.gmra.mxu0 %v187
    %v811 = vpop.f32.mrf.mxu0
    %v812 = vadd.f32 %v798, %v811
    %v813 = vpop.f32.mrf.mxu0
    %v814 = vadd.f32 %v800, %v813
    %815 = vdwg.mxu0
    %v816 = vmax.f32 %v812, 0.0
    %v817 = vmax.f32 %v814, 0.0
    %v818 = vpack.c.bf16 %v817, %v816
    %v819 = vld [vmem:[#allocation7] sm:$0xf]
    %v820 = vld [vmem:[#allocation7 + $0x4] sm:$0xf]
    %v821 = vld [vmem:[#allocation7 + $0x8] sm:$0xf]
    %v822 = vld [vmem:[#allocation7 + $0xc] sm:$0xf]
    %v823 = vld [vmem:[#allocation7 + $0x10] sm:$0xf]
    %v824 = vld [vmem:[#allocation7 + $0x14] sm:$0xf]
    %v825 = vld [vmem:[#allocation7 + $0x18] sm:$0xf]
    %v826 = vld [vmem:[#allocation7 + $0x1c] sm:$0xf]
    %v827 = vld [vmem:[#allocation7 + $0x20] sm:$0xf]
    %v828 = vld [vmem:[#allocation7 + $0x24] sm:$0xf]
    %v829 = vld [vmem:[#allocation7 + $0x28] sm:$0xf]
    %v830 = vld [vmem:[#allocation7 + $0x2c] sm:$0xf]
    %v831 = vld [vmem:[#allocation7 + $0x30] sm:$0xf]
    %v832 = vld [vmem:[#allocation7 + $0x34] sm:$0xf]
    %v833 = vld [vmem:[#allocation7 + $0x38] sm:$0xf]
    %v834 = vld [vmem:[#allocation7 + $0x3c] sm:$0xf]
    %v835 = vld [vmem:[%s5] sm:$0x1]
    %v837 = vperm.slane %v835, 0
    %v855 = vunpack.c.l.b16 %v819
    %v856 = vunpack.c.l.b16 %v820
    %v857 = vunpack.c.l.b16 %v821
    %v858 = vunpack.c.l.b16 %v822
    %v859 = vunpack.c.l.b16 %v823
    %v860 = vunpack.c.l.b16 %v824
    %v861 = vunpack.c.l.b16 %v825
    %v862 = vunpack.c.l.b16 %v826
    %v863 = vunpack.c.l.b16 %v827
    %v864 = vunpack.c.l.b16 %v828
    %v865 = vunpack.c.l.b16 %v829
    %v866 = vunpack.c.l.b16 %v830
    %v867 = vunpack.c.l.b16 %v831
    %v868 = vunpack.c.l.b16 %v832
    %v869 = vunpack.c.l.b16 %v833
    %v870 = vunpack.c.l.b16 %v834
    %v871 = vpack.c.b16 %v856, %v855
    %v872 = vpack.c.b16 %v858, %v857
    %v873 = vpack.c.b16 %v860, %v859
    %v874 = vpack.c.b16 %v862, %v861
    %v875 = vpack.c.b16 %v864, %v863
    %v876 = vpack.c.b16 %v866, %v865
    %v877 = vpack.c.b16 %v868, %v867
    %v878 = vpack.c.b16 %v870, %v869
    %887 = vmatpush.bf16.msra.mxu0 %v878
    %888 = vmatpush.bf16.msra.mxu0 %v877
    %889 = vmatpush.bf16.msra.mxu0 %v876
    %890 = vmatpush.bf16.msra.mxu0 %v875
    %891 = vmatpush.bf16.msra.mxu0 %v874
    %892 = vmatpush.bf16.msra.mxu0 %v873
    %893 = vmatpush.bf16.msra.mxu0 %v872
    %894 = vmatpush.bf16.msra.mxu0 %v871
    %895 = vmatmul.bf16.gmra.mxu0 %v818
    %v896 = vpop.f32.mrf.mxu0
    %v897 = vadd.f32 %v837, %v896
    %v898 = vpop.f32.mrf.mxu0
    %v899 = vadd.f32 %v837, %v898
    %900 = vdwg.mxu0
    %v901 = vmax.f32 %v897, 0.0
    %v902 = vmax.f32 %v899, 0.0
    %v903 = vpack.c.bf16 %v901, %v901
    %v904 = vpack.c.bf16 %v902, %v902
    %v905 = vld [vmem:[#allocation8] sm:$0xf]
    %v906 = vld [vmem:[#allocation8 + $0x4] sm:$0xf]
    %v907 = vld [vmem:[#allocation8 + $0x8] sm:$0xf]
    %v908 = vld [vmem:[#allocation8 + $0xc] sm:$0xf]
    %v909 = vld [vmem:[#allocation8 + $0x10] sm:$0xf]
    %v910 = vld [vmem:[#allocation8 + $0x14] sm:$0xf]
    %v911 = vld [vmem:[#allocation8 + $0x18] sm:$0xf]
    %v912 = vld [vmem:[#allocation8 + $0x1c] sm:$0xf]
    %v913 = vld [vmem:[#allocation8 + $0x20] sm:$0xf]
    %v914 = vld [vmem:[#allocation8 + $0x24] sm:$0xf]
    %v915 = vld [vmem:[#allocation8 + $0x28] sm:$0xf]
    %v916 = vld [vmem:[#allocation8 + $0x2c] sm:$0xf]
    %v917 = vld [vmem:[#allocation8 + $0x30] sm:$0xf]
    %v918 = vld [vmem:[#allocation8 + $0x34] sm:$0xf]
    %v919 = vld [vmem:[#allocation8 + $0x38] sm:$0xf]
    %v920 = vld [vmem:[#allocation8 + $0x3c] sm:$0xf]
    %v921 = vld [vmem:[%s6] sm:$0x1]
    %v923 = vperm.slane %v921, 0
    %v927 = vunpack.c.l.b16 %v903
    %v928 = vunpack.c.l.b16 %v904
    %v929 = vpack.c.b16 %v928, %v927
    %v947 = vunpack.c.l.b16 %v905
    %v948 = vunpack.c.l.b16 %v906
    %v949 = vunpack.c.l.b16 %v907
    %v950 = vunpack.c.l.b16 %v908
    %v951 = vunpack.c.l.b16 %v909
    %v952 = vunpack.c.l.b16 %v910
    %v953 = vunpack.c.l.b16 %v911
    %v954 = vunpack.c.l.b16 %v912
    %v955 = vunpack.c.l.b16 %v913
    %v956 = vunpack.c.l.b16 %v914
    %v957 = vunpack.c.l.b16 %v915
    %v958 = vunpack.c.l.b16 %v916
    %v959 = vunpack.c.l.b16 %v917
    %v960 = vunpack.c.l.b16 %v918
    %v961 = vunpack.c.l.b16 %v919
    %v962 = vunpack.c.l.b16 %v920
    %v963 = vpack.c.b16 %v948, %v947
    %v964 = vpack.c.b16 %v950, %v949
    %v965 = vpack.c.b16 %v952, %v951
    %v966 = vpack.c.b16 %v954, %v953
    %v967 = vpack.c.b16 %v956, %v955
    %v968 = vpack.c.b16 %v958, %v957
    %v969 = vpack.c.b16 %v960, %v959
    %v970 = vpack.c.b16 %v962, %v961
    %979 = vmatpush.bf16.msra.mxu0 %v970
    %980 = vmatpush.bf16.msra.mxu0 %v969
    %981 = vmatpush.bf16.msra.mxu0 %v968
    %982 = vmatpush.bf16.msra.mxu0 %v967
    %983 = vmatpush.bf16.msra.mxu0 %v966
    %984 = vmatpush.bf16.msra.mxu0 %v965
    %985 = vmatpush.bf16.msra.mxu0 %v964
    %986 = vmatpush.bf16.msra.mxu0 %v963
    %987 = vmatmul.bf16.gmra.mxu0 %v929
    %v988 = vpop.f32.mrf.mxu0
    %v989 = vadd.f32 %v923, %v988
    %v990 = vpop.f32.mrf.mxu0
    %v991 = vadd.f32 %v923, %v990
    %992 = vdwg.mxu0
    %v993 = vpack.c.bf16 %v989, %v989
    %v994 = vpack.c.bf16 %v991, %v991
    %v997 = vrot.slane %v993, 3
    %v998 = vrot.slane %v994, 3
    %vm999 = vcmask 1040384
    %v1002 = vsel %vm999, %v993, %v997
    %vm1003 = vcmask 1041409
    %v1004 = vsel %vm1003, %v993, %v997
    %v1006 = vrot.slane %v1004, 1
    %vm1007 = vcmask 1042434
    %v1008 = vsel %vm1007, %v993, %v997
    %v1010 = vrot.slane %v1008, 2
    %vm1011 = vcmask 1043459
    %v1012 = vsel %vm1011, %v993, %v997
    %v1014 = vrot.slane %v1012, 3
    %v1017 = vsel %vm999, %v994, %v998
    %v1018 = vsel %vm1003, %v994, %v998
    %v1020 = vrot.slane %v1018, 1
    %v1021 = vsel %vm1007, %v994, %v998
    %v1023 = vrot.slane %v1021, 2
    %v1024 = vsel %vm1011, %v994, %v998
    %v1026 = vrot.slane %v1024, 3
    %1035 = vst [vmem:[#allocation10] sm:$0x1] %v1002
    %1036 = vst [vmem:[#allocation10 + $0x1] sm:$0x1] %v1006
    %1037 = vst [vmem:[#allocation10 + $0x2] sm:$0x1] %v1010
    %1038 = vst [vmem:[#allocation10 + $0x3] sm:$0x1] %v1014
    %1039 = vst [vmem:[#allocation10 + $0x4] sm:$0x1] %v1017
    %1040 = vst [vmem:[#allocation10 + $0x5] sm:$0x1] %v1020
    %1041 = vst [vmem:[#allocation10 + $0x6] sm:$0x1] %v1023
    %1042 = vst [vmem:[#allocation10 + $0x7] sm:$0x1] %v1026
    %v1043 = vrot.slane %v903, 3
    %v1044 = vrot.slane %v904, 3
    %v1047 = vsel %vm999, %v903, %v1043
    %v1048 = vsel %vm1003, %v903, %v1043
    %v1050 = vrot.slane %v1048, 1
    %v1051 = vsel %vm1007, %v903, %v1043
    %v1053 = vrot.slane %v1051, 2
    %v1054 = vsel %vm1011, %v903, %v1043
    %v1056 = vrot.slane %v1054, 3
    %v1059 = vsel %vm999, %v904, %v1044
    %v1060 = vsel %vm1003, %v904, %v1044
    %v1062 = vrot.slane %v1060, 1
    %v1063 = vsel %vm1007, %v904, %v1044
    %v1065 = vrot.slane %v1063, 2
    %v1066 = vsel %vm1011, %v904, %v1044
    %v1068 = vrot.slane %v1066, 3
    %1077 = vst [vmem:[#allocation11] sm:$0x1] %v1047
    %1078 = vst [vmem:[#allocation11 + $0x1] sm:$0x1] %v1050
    %1079 = vst [vmem:[#allocation11 + $0x2] sm:$0x1] %v1053
    %1080 = vst [vmem:[#allocation11 + $0x3] sm:$0x1] %v1056
    %1081 = vst [vmem:[#allocation11 + $0x4] sm:$0x1] %v1059
    %1082 = vst [vmem:[#allocation11 + $0x5] sm:$0x1] %v1062
    %1083 = vst [vmem:[#allocation11 + $0x6] sm:$0x1] %v1065
    %1084 = vst [vmem:[#allocation11 + $0x7] sm:$0x1] %v1068
    // Predicated region
    $region46: #{tpu_custom_call.1} parent=1 // pred_check
      _
    $region47: #{tpu_custom_call.1} parent=1 // pred_check_branch
      %1086 = sbr.rel (0) target = $region49
    $region48: #{tpu_custom_call.1} parent=1 // pred_region
      %1088 = vsyncadd [#allocation4], 112
      %s1089 = sshll.u32 [#allocation10], 4
      %s1090 = int_to_ptr.vmem [resolvable:$true] %s1089
      %s1091 = sshll.u32 %s7, 4
      %s1092 = int_to_ptr.hbm [resolvable:$true] %s1091
      %1097 = dma.vmem_to_hbm [thread:$0]  %s1090, 16, %s1092, [#allocation4], 16, 16, 1
    $region49: #{tpu_custom_call.1} parent=1 // pred_fallthru
      _
    // Predicated region
    $region50: #{tpu_custom_call.1} parent=1 // pred_check
      _
    $region51: #{tpu_custom_call.1} parent=1 // pred_check_branch
      %1099 = sbr.rel (0) target = $region53
    $region52: #{tpu_custom_call.1} parent=1 // pred_region
      %1101 = vsyncadd [#allocation12], 112
      %s1102 = sshll.u32 [#allocation11], 4
      %s1103 = int_to_ptr.vmem [resolvable:$true] %s1102
      %s1104 = sshll.u32 %s8, 4
      %s1105 = int_to_ptr.hbm [resolvable:$true] %s1104
      %1110 = dma.vmem_to_hbm [thread:$0]  %s1103, 16, %s1105, [#allocation12], 16, 16, 1
    $region53: #{tpu_custom_call.1} parent=1 // pred_fallthru
      _
    // Predicated region
    $region54: #{tpu_custom_call.1} parent=1 // pred_check
      _
    $region55: #{tpu_custom_call.1} parent=1 // pred_check_branch
      %1112 = sbr.rel (0) target = $region57
    $region56: #{tpu_custom_call.1} parent=1 // pred_region
      %1114 = dma.done [#allocation4], 128
    $region57: #{tpu_custom_call.1} parent=1 // pred_fallthru
      _
    // Predicated region
    $region58: #{tpu_custom_call.1} parent=1 // pred_check
      _
    $region59: #{tpu_custom_call.1} parent=1 // pred_check_branch
      %1116 = sbr.rel (0) target = $region61
    $region60: #{tpu_custom_call.1} parent=1 // pred_region
      %1118 = dma.done [#allocation12], 128
    $region61: #{tpu_custom_call.1} parent=1 // pred_fallthru
      _
    %1119 = vsyncpa [#allocation3], 1
    %1120 = vsyncpa [#allocation6], 1
    %1121 = vsyncpa [#allocation9], 1
    %1122 = vsyncpa [#allocation4], 1
    %1123 = vsyncpa [#allocation12], 1

</llo_original>
